<compile_context>
chip_gen: v7x
topology: tpu7x:2x2x1
jax: 0.10.0
libtpu: 0.0.40
codegen_flags: <defaults>
</compile_context>

<pallas_src>
import functools

import jax
import jax.numpy as jnp
from jax.experimental import pallas as pl
from jax.experimental.pallas import tpu as pltpu


def _round_up(v, m):
    return ((v + m - 1) // m) * m


def mean_autoencoder_kernel(
    x_ref,
    we1_ref, be1_ref, we2_ref, be2_ref,
    wd1_ref, bd1_ref, wd2_ref, bd2_ref,
    wl_ref, bl_ref,
    vec_ref, vecs_ref, loss_ref,
    *, nk, elem_num,
):
    """One grid step == one task. Block shapes are fully (8,128)-aligned."""
    x = x_ref[0]                                   # [NK_pad, E_pad] f32 (zero-padded)
    bf16 = jnp.bfloat16

    # ----- encoder: Linear -> ReLU -> Linear -> ReLU ------------------------
    h = jnp.dot(x.astype(bf16), we1_ref[...], preferred_element_type=jnp.float32)
    h = jnp.maximum(h + be1_ref[...], 0.0)
    te = jnp.dot(h.astype(bf16), we2_ref[...], preferred_element_type=jnp.float32)
    te = jnp.maximum(te + be2_ref[...], 0.0)
    te_b = te.astype(bf16)

    # ----- decoder: Linear -> ReLU -> Linear --------------------------------
    d = jnp.dot(te_b, wd1_ref[...], preferred_element_type=jnp.float32)
    d = jnp.maximum(d + bd1_ref[...], 0.0)
    x_rec = jnp.dot(d.astype(bf16), wd2_ref[...], preferred_element_type=jnp.float32)
    x_rec = x_rec + bd2_ref[...]

    # Row-validity mask: padded rows of x are zero but produce nonzero x_rec
    # (biases leak through), so they must be excluded from the loss / means.
    # Padded *columns* are exactly zero on both sides (zero-padded weights/biases).
    row_valid = jax.lax.broadcasted_iota(jnp.int32, (x.shape[0], 1), 0) < nk

    # ----- reconstruction loss: 0.5 * MSE over the ORIGINAL nk*elem_num -----
    diff = jnp.where(row_valid, x - x_rec, 0.0)
    loss = 0.5 * jnp.sum(diff * diff) / float(nk * elem_num)
    loss_ref[...] = loss * jnp.ones(loss_ref.shape, jnp.float32)   # lane-dense row

    # ----- last_fc: Linear -> ReLU, then mean over the NK axis --------------
    vecs = jnp.dot(te_b, wl_ref[...], preferred_element_type=jnp.float32)
    vecs = jnp.maximum(vecs + bl_ref[...], 0.0)
    vecs = jnp.where(row_valid, vecs, 0.0)         # zero padded rows (sliced later)
    vecs_ref[0] = vecs
    vec_ref[0] = jnp.sum(vecs, axis=0, keepdims=True) / float(nk)


@jax.jit
def mean_autoencoder_batched(x, params):
    """x: [T, NK, elem_num] f32.  Returns (vec [T, ted], vecs [T, NK, ted], loss [T])."""
    T, nk, elem = x.shape
    hidden = params["we1"].shape[1]
    ted = params["wl"].shape[1]

    nk_p = max(_round_up(nk, 8), 8)
    e_p = _round_up(elem, 128)
    h_p = _round_up(hidden, 128)
    t_p = _round_up(ted, 128)

    def pad2(w, r, c):
        return jnp.pad(w, ((0, r - w.shape[0]), (0, c - w.shape[1])))

    bf16 = jnp.bfloat16
    # Weights: zero-padded once, stored bf16 (halves resident weight bytes / DMA).
    we1 = pad2(params["we1"], e_p, h_p).astype(bf16)
    we2 = pad2(params["we2"], h_p, t_p).astype(bf16)
    wd1 = pad2(params["wd1"], t_p, h_p).astype(bf16)
    wd2 = pad2(params["wd2"], h_p, e_p).astype(bf16)
    wl = pad2(params["wl"], t_p, t_p).astype(bf16)
    # Biases stay f32 (elementwise math stays f32 on all generations).
    be1 = pad2(params["be1"], 1, h_p).astype(jnp.float32)
    be2 = pad2(params["be2"], 1, t_p).astype(jnp.float32)
    bd1 = pad2(params["bd1"], 1, h_p).astype(jnp.float32)
    bd2 = pad2(params["bd2"], 1, e_p).astype(jnp.float32)
    bl = pad2(params["bl"], 1, t_p).astype(jnp.float32)

    x_p = jnp.pad(x.astype(jnp.float32),
                  ((0, 0), (0, nk_p - nk), (0, e_p - elem)))

    # Weights/biases: full-array blocks with constant index_map -> fetched once,
    # VMEM-resident across the whole task grid.
    const_spec = lambda arr: pl.BlockSpec(arr.shape, lambda t: (0, 0))

    in_specs = [
        pl.BlockSpec((1, nk_p, e_p), lambda t: (t, 0, 0)),       # x
        const_spec(we1), const_spec(be1), const_spec(we2), const_spec(be2),
        const_spec(wd1), const_spec(bd1), const_spec(wd2), const_spec(bd2),
        const_spec(wl), const_spec(bl),
    ]
    out_specs = (
        pl.BlockSpec((1, 1, t_p), lambda t: (t, 0, 0)),          # task_emb_vec
        pl.BlockSpec((1, nk_p, t_p), lambda t: (t, 0, 0)),       # task_emb_vecs
        pl.BlockSpec((1, 1, 128), lambda t: (t, 0, 0)),          # loss (lane-dense row)
    )
    out_shape = (
        jax.ShapeDtypeStruct((T, 1, t_p), jnp.float32),
        jax.ShapeDtypeStruct((T, nk_p, t_p), jnp.float32),
        jax.ShapeDtypeStruct((T, 1, 128), jnp.float32),
    )

    # Advisory cost estimate so XLA can overlap this small call with neighbors.
    mm_terms = e_p * h_p + h_p * t_p + t_p * h_p + h_p * e_p + t_p * t_p
    flops = 2 * T * nk_p * mm_terms
    bytes_accessed = (
        2 * mm_terms                                    # bf16 weights (fetched once)
        + 4 * (h_p + t_p + h_p + e_p + t_p)             # f32 biases
        + 4 * T * (nk_p * e_p + t_p + nk_p * t_p + 128) # x + outputs
    )
    cost = pl.CostEstimate(flops=flops, transcendentals=0,
                           bytes_accessed=bytes_accessed)

    kernel = functools.partial(mean_autoencoder_kernel, nk=nk, elem_num=elem)

    vec, vecs, loss_row = pl.pallas_call(
        kernel,
        out_shape=out_shape,
        grid=(T,),
        in_specs=in_specs,
        out_specs=out_specs,
        compiler_params=pltpu.CompilerParams(
            dimension_semantics=("parallel",)),     # shards tasks across TCs on v7x
        cost_estimate=cost,
    )(x_p, we1, be1, we2, be2, wd1, bd1, wd2, bd2, wl, bl)

    return vec[:, 0, :ted], vecs[:, :nk, :ted], loss_row[:, 0, 0]


def mean_autoencoder(x, params):
    """Single-task API matching the PyTorch module: x [NK, elem_num].

    Returns (task_emb_vec [1, ted], task_emb_vecs [NK, ted], loss_rec scalar)."""
    vec, vecs, loss = mean_autoencoder_batched(x[None], params)
    return vec[0:1], vecs[0], loss[0]


def init_params(key, elem_num, hidden_num, task_emb_dim):
    """Deterministic synthetic parameters (PyTorch nn.Linear shapes, pre-transposed)."""
    ks = jax.random.split(key, 10)

    def lin(kw, kb, fan_in, fan_out):
        bound = 1.0 / jnp.sqrt(fan_in)
        w = jax.random.uniform(kw, (fan_in, fan_out), jnp.float32, -bound, bound)
        b = jax.random.uniform(kb, (1, fan_out), jnp.float32, -bound, bound)
        return w, b

    we1, be1 = lin(ks[0], ks[1], elem_num, hidden_num)
    we2, be2 = lin(ks[2], ks[3], hidden_num, task_emb_dim)
    wd1, bd1 = lin(ks[4], ks[5], task_emb_dim, hidden_num)
    wd2, bd2 = lin(ks[6], ks[7], hidden_num, elem_num)
    wl, bl = lin(ks[8], ks[9], task_emb_dim, task_emb_dim)
    return dict(we1=we1, be1=be1, we2=we2, be2=be2,
                wd1=wd1, bd1=bd1, wd2=wd2, bd2=bd2,
                wl=wl, bl=bl)


def reference(x, p):
    relu = lambda a: jnp.maximum(a, 0.0)
    h = relu(x @ p["we1"] + p["be1"])
    task_emb = relu(h @ p["we2"] + p["be2"])
    d = relu(task_emb @ p["wd1"] + p["bd1"])
    x_rec = d @ p["wd2"] + p["bd2"]
    loss = 0.5 * jnp.mean((x - x_rec) ** 2)
    vecs = relu(task_emb @ p["wl"] + p["bl"])
    vec = jnp.mean(vecs, axis=0, keepdims=True)
    return vec, vecs, loss


if __name__ == "__main__":
    # Module-implied sizes: n_way=5 -> elem_num = 64 + 5 = 69, hidden=96, task_emb_dim=128.
    n_way = 5
    elem_num = 64 + n_way
    hidden_num = 96
    task_emb_dim = 128
    nk = 10          # NK support images per task
    num_tasks = 6    # batched-over-grid test

    key = jax.random.PRNGKey(0)
    k_x, k_xb, k_p = jax.random.split(key, 3)
    x_single = jax.random.normal(k_x, (nk, elem_num), dtype=jnp.float32)
    x_batch = jax.random.normal(k_xb, (num_tasks, nk, elem_num), dtype=jnp.float32)
    params = init_params(k_p, elem_num, hidden_num, task_emb_dim)

    # --- single task (matches the PyTorch module signature) -----------------
    vec, vecs, loss = mean_autoencoder(x_single, params)
    jax.block_until_ready((vec, vecs, loss))

    rvec, rvecs, rloss = reference(x_single, params)
    assert vec.shape == (1, task_emb_dim)
    assert vecs.shape == (nk, task_emb_dim)
    # bf16 MXU operands -> loosened tolerances (f32 accumulation + f32 elementwise)
    assert jnp.allclose(vec, rvec, atol=2e-2, rtol=2e-2)
    assert jnp.allclose(vecs, rvecs, atol=2e-2, rtol=2e-2)
    assert jnp.allclose(loss, rloss, atol=2e-2, rtol=2e-2)

    # --- batched over the task grid -----------------------------------------
    bvec, bvecs, bloss = mean_autoencoder_batched(x_batch, params)
    jax.block_until_ready((bvec, bvecs, bloss))

    rbvec, rbvecs, rbloss = jax.vmap(lambda xt: reference(xt, params))(x_batch)
    assert bvec.shape == (num_tasks, task_emb_dim)
    assert bvecs.shape == (num_tasks, nk, task_emb_dim)
    assert bloss.shape == (num_tasks,)
    assert jnp.allclose(bvec, rbvec[:, 0, :], atol=2e-2, rtol=2e-2)
    assert jnp.allclose(bvecs, rbvecs, atol=2e-2, rtol=2e-2)
    assert jnp.allclose(bloss, rbloss, atol=2e-2, rtol=2e-2)

    print("KERNEL_OK")
</pallas_src>

<mosaic_0001>
module attributes {stable_mosaic.version = 11 : i64} {
  func.func @mean_autoencoder_kernel(%arg0: i32, %arg1: memref<1x16x128xf32, #tpu.memory_space<vmem>>, %arg2: memref<128x128xbf16, #tpu.memory_space<vmem>>, %arg3: memref<1x128xf32, #tpu.memory_space<vmem>>, %arg4: memref<128x128xbf16, #tpu.memory_space<vmem>>, %arg5: memref<1x128xf32, #tpu.memory_space<vmem>>, %arg6: memref<128x128xbf16, #tpu.memory_space<vmem>>, %arg7: memref<1x128xf32, #tpu.memory_space<vmem>>, %arg8: memref<128x128xbf16, #tpu.memory_space<vmem>>, %arg9: memref<1x128xf32, #tpu.memory_space<vmem>>, %arg10: memref<128x128xbf16, #tpu.memory_space<vmem>>, %arg11: memref<1x128xf32, #tpu.memory_space<vmem>>, %arg12: memref<1x1x128xf32, #tpu.memory_space<vmem>>, %arg13: memref<1x16x128xf32, #tpu.memory_space<vmem>>, %arg14: memref<1x1x128xf32, #tpu.memory_space<vmem>>) attributes {dimension_semantics = [#tpu.dimension_semantics<parallel>], iteration_bounds = array<i64: 1>, scalar_prefetch = 0 : i64, scratch_operands = 0 : i64, tpu.core_type = #tpu.core_type<tc>, window_params = [{transform_indices = @transform_0, window_bounds = array<i64: 1, 16, 128>}, {pipeline_mode = #tpu.pipeline_mode<synchronous>, transform_indices = @transform_1, window_bounds = array<i64: 128, 128>}, {pipeline_mode = #tpu.pipeline_mode<synchronous>, transform_indices = @transform_2, window_bounds = array<i64: 1, 128>}, {pipeline_mode = #tpu.pipeline_mode<synchronous>, transform_indices = @transform_3, window_bounds = array<i64: 128, 128>}, {pipeline_mode = #tpu.pipeline_mode<synchronous>, transform_indices = @transform_4, window_bounds = array<i64: 1, 128>}, {pipeline_mode = #tpu.pipeline_mode<synchronous>, transform_indices = @transform_5, window_bounds = array<i64: 128, 128>}, {pipeline_mode = #tpu.pipeline_mode<synchronous>, transform_indices = @transform_6, window_bounds = array<i64: 1, 128>}, {pipeline_mode = #tpu.pipeline_mode<synchronous>, transform_indices = @transform_7, window_bounds = array<i64: 128, 128>}, {pipeline_mode = #tpu.pipeline_mode<synchronous>, transform_indices = @transform_8, window_bounds = array<i64: 1, 128>}, {pipeline_mode = #tpu.pipeline_mode<synchronous>, transform_indices = @transform_9, window_bounds = array<i64: 128, 128>}, {pipeline_mode = #tpu.pipeline_mode<synchronous>, transform_indices = @transform_10, window_bounds = array<i64: 1, 128>}, {transform_indices = @transform_11, window_bounds = array<i64: 1, 1, 128>}, {transform_indices = @transform_12, window_bounds = array<i64: 1, 16, 128>}, {transform_indices = @transform_13, window_bounds = array<i64: 1, 1, 128>}]} {
    %c0 = arith.constant 0 : index
    %c0_0 = arith.constant 0 : index
    %c0_1 = arith.constant 0 : index
    %0 = vector.load %arg1[%c0, %c0_0, %c0_1] : memref<1x16x128xf32, #tpu.memory_space<vmem>>, vector<1x16x128xf32>
    %1 = vector.shape_cast %0 : vector<1x16x128xf32> to vector<16x128xf32>
    %2 = arith.truncf %1 : vector<16x128xf32> to vector<16x128xbf16>
    %c0_2 = arith.constant 0 : index
    %c0_3 = arith.constant 0 : index
    %3 = vector.load %arg2[%c0_2, %c0_3] : memref<128x128xbf16, #tpu.memory_space<vmem>>, vector<128x128xbf16>
    %cst = arith.constant dense<0.000000e+00> : vector<16x128xf32>
    %4 = tpu.matmul %2, %3, %cst {dimension_numbers = #tpu.dot_dimension_numbers<[1], [0], [0], [1], [0, 0, 1, 1], [], []>} : vector<16x128xbf16>, vector<128x128xbf16>, vector<16x128xf32> -> vector<16x128xf32>
    %c0_4 = arith.constant 0 : index
    %c0_5 = arith.constant 0 : index
    %5 = vector.load %arg3[%c0_4, %c0_5] : memref<1x128xf32, #tpu.memory_space<vmem>>, vector<1x128xf32>
    %6 = vector.broadcast %5 : vector<1x128xf32> to vector<16x128xf32>
    %7 = arith.addf %4, %6 : vector<16x128xf32>
    %cst_6 = arith.constant 0.000000e+00 : f32
    %8 = vector.broadcast %cst_6 : f32 to vector<16x128xf32>
    %9 = arith.maximumf %7, %8 : vector<16x128xf32>
    %10 = arith.truncf %9 : vector<16x128xf32> to vector<16x128xbf16>
    %c0_7 = arith.constant 0 : index
    %c0_8 = arith.constant 0 : index
    %11 = vector.load %arg4[%c0_7, %c0_8] : memref<128x128xbf16, #tpu.memory_space<vmem>>, vector<128x128xbf16>
    %cst_9 = arith.constant dense<0.000000e+00> : vector<16x128xf32>
    %12 = tpu.matmul %10, %11, %cst_9 {dimension_numbers = #tpu.dot_dimension_numbers<[1], [0], [0], [1], [0, 0, 1, 1], [], []>} : vector<16x128xbf16>, vector<128x128xbf16>, vector<16x128xf32> -> vector<16x128xf32>
    %c0_10 = arith.constant 0 : index
    %c0_11 = arith.constant 0 : index
    %13 = vector.load %arg5[%c0_10, %c0_11] : memref<1x128xf32, #tpu.memory_space<vmem>>, vector<1x128xf32>
    %14 = vector.broadcast %13 : vector<1x128xf32> to vector<16x128xf32>
    %15 = arith.addf %12, %14 : vector<16x128xf32>
    %cst_12 = arith.constant 0.000000e+00 : f32
    %16 = vector.broadcast %cst_12 : f32 to vector<16x128xf32>
    %17 = arith.maximumf %15, %16 : vector<16x128xf32>
    %18 = arith.truncf %17 : vector<16x128xf32> to vector<16x128xbf16>
    %c0_13 = arith.constant 0 : index
    %c0_14 = arith.constant 0 : index
    %19 = vector.load %arg6[%c0_13, %c0_14] : memref<128x128xbf16, #tpu.memory_space<vmem>>, vector<128x128xbf16>
    %cst_15 = arith.constant dense<0.000000e+00> : vector<16x128xf32>
    %20 = tpu.matmul %18, %19, %cst_15 {dimension_numbers = #tpu.dot_dimension_numbers<[1], [0], [0], [1], [0, 0, 1, 1], [], []>} : vector<16x128xbf16>, vector<128x128xbf16>, vector<16x128xf32> -> vector<16x128xf32>
    %c0_16 = arith.constant 0 : index
    %c0_17 = arith.constant 0 : index
    %21 = vector.load %arg7[%c0_16, %c0_17] : memref<1x128xf32, #tpu.memory_space<vmem>>, vector<1x128xf32>
    %22 = vector.broadcast %21 : vector<1x128xf32> to vector<16x128xf32>
    %23 = arith.addf %20, %22 : vector<16x128xf32>
    %cst_18 = arith.constant 0.000000e+00 : f32
    %24 = vector.broadcast %cst_18 : f32 to vector<16x128xf32>
    %25 = arith.maximumf %23, %24 : vector<16x128xf32>
    %26 = arith.truncf %25 : vector<16x128xf32> to vector<16x128xbf16>
    %c0_19 = arith.constant 0 : index
    %c0_20 = arith.constant 0 : index
    %27 = vector.load %arg8[%c0_19, %c0_20] : memref<128x128xbf16, #tpu.memory_space<vmem>>, vector<128x128xbf16>
    %cst_21 = arith.constant dense<0.000000e+00> : vector<16x128xf32>
    %28 = tpu.matmul %26, %27, %cst_21 {dimension_numbers = #tpu.dot_dimension_numbers<[1], [0], [0], [1], [0, 0, 1, 1], [], []>} : vector<16x128xbf16>, vector<128x128xbf16>, vector<16x128xf32> -> vector<16x128xf32>
    %c0_22 = arith.constant 0 : index
    %c0_23 = arith.constant 0 : index
    %29 = vector.load %arg9[%c0_22, %c0_23] : memref<1x128xf32, #tpu.memory_space<vmem>>, vector<1x128xf32>
    %30 = vector.broadcast %29 : vector<1x128xf32> to vector<16x128xf32>
    %31 = arith.addf %28, %30 : vector<16x128xf32>
    %32 = tpu.iota {dimensions = array<i32: 0>} : vector<16x1xi32>
    %c10_i32 = arith.constant 10 : i32
    %33 = vector.broadcast %c10_i32 : i32 to vector<16x1xi32>
    %34 = arith.cmpi slt, %32, %33 : vector<16x1xi32>
    %35 = arith.subf %1, %31 : vector<16x128xf32>
    %cst_24 = arith.constant 0.000000e+00 : f32
    %36 = vector.shape_cast %34 : vector<16x1xi1> to vector<16x1xi1>
    %37 = vector.broadcast %36 : vector<16x1xi1> to vector<16x128xi1>
    %38 = vector.broadcast %cst_24 : f32 to vector<16x128xf32>
    %39 = arith.select %37, %35, %38 : vector<16x128xi1>, vector<16x128xf32>
    %40 = arith.mulf %39, %39 : vector<16x128xf32>
    %41 = vector.shape_cast %40 : vector<16x128xf32> to vector<1x16x128xf32>
    %cst_25 = arith.constant dense<0.000000e+00> : vector<1xf32>
    %42 = vector.multi_reduction <add>, %41, %cst_25 [1, 2] : vector<1x16x128xf32> to vector<1xf32>
    %43 = vector.shape_cast %42 : vector<1xf32> to vector<1x1x1xf32>
    %44 = vector.extract %43[0, 0, 0] : f32 from vector<1x1x1xf32>
    %cst_26 = arith.constant 5.000000e-01 : f32
    %45 = arith.mulf %cst_26, %44 : f32
    %cst_27 = arith.constant 6.900000e+02 : f32
    %46 = arith.divf %45, %cst_27 : f32
    %cst_28 = arith.constant 1.000000e+00 : f32
    %47 = vector.broadcast %cst_28 : f32 to vector<1x1x128xf32>
    %48 = vector.broadcast %46 : f32 to vector<1x1x128xf32>
    %49 = arith.mulf %48, %47 : vector<1x1x128xf32>
    %c0_29 = arith.constant 0 : index
    %c0_30 = arith.constant 0 : index
    %c0_31 = arith.constant 0 : index
    %50 = vector.load %arg14[%c0_29, %c0_30, %c0_31] : memref<1x1x128xf32, #tpu.memory_space<vmem>>, vector<1x1x128xf32>
    tpu.vector_store %arg14[%c0_29, %c0_30, %c0_31], %49 {strides = array<i32>} : memref<1x1x128xf32, #tpu.memory_space<vmem>>, vector<1x1x128xf32>,
    %c0_32 = arith.constant 0 : index
    %c0_33 = arith.constant 0 : index
    %51 = vector.load %arg10[%c0_32, %c0_33] : memref<128x128xbf16, #tpu.memory_space<vmem>>, vector<128x128xbf16>
    %cst_34 = arith.constant dense<0.000000e+00> : vector<16x128xf32>
    %52 = tpu.matmul %18, %51, %cst_34 {dimension_numbers = #tpu.dot_dimension_numbers<[1], [0], [0], [1], [0, 0, 1, 1], [], []>} : vector<16x128xbf16>, vector<128x128xbf16>, vector<16x128xf32> -> vector<16x128xf32>
    %c0_35 = arith.constant 0 : index
    %c0_36 = arith.constant 0 : index
    %53 = vector.load %arg11[%c0_35, %c0_36] : memref<1x128xf32, #tpu.memory_space<vmem>>, vector<1x128xf32>
    %54 = vector.broadcast %53 : vector<1x128xf32> to vector<16x128xf32>
    %55 = arith.addf %52, %54 : vector<16x128xf32>
    %cst_37 = arith.constant 0.000000e+00 : f32
    %56 = vector.broadcast %cst_37 : f32 to vector<16x128xf32>
    %57 = arith.maximumf %55, %56 : vector<16x128xf32>
    %cst_38 = arith.constant 0.000000e+00 : f32
    %58 = vector.shape_cast %34 : vector<16x1xi1> to vector<16x1xi1>
    %59 = vector.broadcast %58 : vector<16x1xi1> to vector<16x128xi1>
    %60 = vector.broadcast %cst_38 : f32 to vector<16x128xf32>
    %61 = arith.select %59, %57, %60 : vector<16x128xi1>, vector<16x128xf32>
    %c0_39 = arith.constant 0 : index
    %c0_40 = arith.constant 0 : index
    %c0_41 = arith.constant 0 : index
    %62 = vector.load %arg13[%c0_39, %c0_40, %c0_41] : memref<1x16x128xf32, #tpu.memory_space<vmem>>, vector<1x16x128xf32>
    %63 = vector.shape_cast %62 : vector<1x16x128xf32> to vector<16x128xf32>
    %64 = vector.shape_cast %61 : vector<16x128xf32> to vector<1x16x128xf32>
    tpu.vector_store %arg13[%c0_39, %c0_40, %c0_41], %64 {strides = array<i32>} : memref<1x16x128xf32, #tpu.memory_space<vmem>>, vector<1x16x128xf32>,
    %cst_42 = arith.constant dense<0.000000e+00> : vector<128xf32>
    %65 = vector.multi_reduction <add>, %61, %cst_42 [0] : vector<16x128xf32> to vector<128xf32>
    %66 = vector.shape_cast %65 : vector<128xf32> to vector<1x128xf32>
    %cst_43 = arith.constant 1.000000e+01 : f32
    %67 = vector.broadcast %cst_43 : f32 to vector<1x128xf32>
    %68 = arith.divf %66, %67 : vector<1x128xf32>
    %c0_44 = arith.constant 0 : index
    %c0_45 = arith.constant 0 : index
    %c0_46 = arith.constant 0 : index
    %69 = vector.load %arg12[%c0_44, %c0_45, %c0_46] : memref<1x1x128xf32, #tpu.memory_space<vmem>>, vector<1x1x128xf32>
    %70 = vector.shape_cast %69 : vector<1x1x128xf32> to vector<1x128xf32>
    %71 = vector.shape_cast %68 : vector<1x128xf32> to vector<1x1x128xf32>
    tpu.vector_store %arg12[%c0_44, %c0_45, %c0_46], %71 {strides = array<i32>} : memref<1x1x128xf32, #tpu.memory_space<vmem>>, vector<1x1x128xf32>,
    return
  }
  func.func @transform_0(%arg0: i32) -> (i32, i32, i32) {
    %c0_i32 = arith.constant 0 : i32
    %c0_i32_0 = arith.constant 0 : i32
    %c0_i32_1 = arith.constant 0 : i32
    return %arg0, %c0_i32, %c0_i32_0 : i32, i32, i32
  }
  func.func @transform_1(%arg0: i32) -> (i32, i32) {
    %c0_i32 = arith.constant 0 : i32
    %c0_i32_0 = arith.constant 0 : i32
    %c0_i32_1 = arith.constant 0 : i32
    return %c0_i32, %c0_i32_0 : i32, i32
  }
  func.func @transform_2(%arg0: i32) -> (i32, i32) {
    %c0_i32 = arith.constant 0 : i32
    %c0_i32_0 = arith.constant 0 : i32
    %c0_i32_1 = arith.constant 0 : i32
    return %c0_i32, %c0_i32_0 : i32, i32
  }
  func.func @transform_3(%arg0: i32) -> (i32, i32) {
    %c0_i32 = arith.constant 0 : i32
    %c0_i32_0 = arith.constant 0 : i32
    %c0_i32_1 = arith.constant 0 : i32
    return %c0_i32, %c0_i32_0 : i32, i32
  }
  func.func @transform_4(%arg0: i32) -> (i32, i32) {
    %c0_i32 = arith.constant 0 : i32
    %c0_i32_0 = arith.constant 0 : i32
    %c0_i32_1 = arith.constant 0 : i32
    return %c0_i32, %c0_i32_0 : i32, i32
  }
  func.func @transform_5(%arg0: i32) -> (i32, i32) {
    %c0_i32 = arith.constant 0 : i32
    %c0_i32_0 = arith.constant 0 : i32
    %c0_i32_1 = arith.constant 0 : i32
    return %c0_i32, %c0_i32_0 : i32, i32
  }
  func.func @transform_6(%arg0: i32) -> (i32, i32) {
    %c0_i32 = arith.constant 0 : i32
    %c0_i32_0 = arith.constant 0 : i32
    %c0_i32_1 = arith.constant 0 : i32
    return %c0_i32, %c0_i32_0 : i32, i32
  }
  func.func @transform_7(%arg0: i32) -> (i32, i32) {
    %c0_i32 = arith.constant 0 : i32
    %c0_i32_0 = arith.constant 0 : i32
    %c0_i32_1 = arith.constant 0 : i32
    return %c0_i32, %c0_i32_0 : i32, i32
  }
  func.func @transform_8(%arg0: i32) -> (i32, i32) {
    %c0_i32 = arith.constant 0 : i32
    %c0_i32_0 = arith.constant 0 : i32
    %c0_i32_1 = arith.constant 0 : i32
    return %c0_i32, %c0_i32_0 : i32, i32
  }
  func.func @transform_9(%arg0: i32) -> (i32, i32) {
    %c0_i32 = arith.constant 0 : i32
    %c0_i32_0 = arith.constant 0 : i32
    %c0_i32_1 = arith.constant 0 : i32
    return %c0_i32, %c0_i32_0 : i32, i32
  }
  func.func @transform_10(%arg0: i32) -> (i32, i32) {
    %c0_i32 = arith.constant 0 : i32
    %c0_i32_0 = arith.constant 0 : i32
    %c0_i32_1 = arith.constant 0 : i32
    return %c0_i32, %c0_i32_0 : i32, i32
  }
  func.func @transform_11(%arg0: i32) -> (i32, i32, i32) {
    %c0_i32 = arith.constant 0 : i32
    %c0_i32_0 = arith.constant 0 : i32
    %c0_i32_1 = arith.constant 0 : i32
    return %arg0, %c0_i32, %c0_i32_0 : i32, i32, i32
  }
  func.func @transform_12(%arg0: i32) -> (i32, i32, i32) {
    %c0_i32 = arith.constant 0 : i32
    %c0_i32_0 = arith.constant 0 : i32
    %c0_i32_1 = arith.constant 0 : i32
    return %arg0, %c0_i32, %c0_i32_0 : i32, i32, i32
  }
  func.func @transform_13(%arg0: i32) -> (i32, i32, i32) {
    %c0_i32 = arith.constant 0 : i32
    %c0_i32_0 = arith.constant 0 : i32
    %c0_i32_1 = arith.constant 0 : i32
    return %arg0, %c0_i32, %c0_i32_0 : i32, i32, i32
  }
}

</mosaic_0001>

<llo_original>
// kernel: mean_autoencoder_batched.1
$region0: #{mean_autoencoder_batched.1}
  #allocation0 [shape = 'u32[]', space=smem, size = 0x4, offset = 0x4, fixed_abs, tag = 'smem constant byte address 0x4 - core index']
  #allocation1 [shape = 'u32[144,128]{1,0:T(1,128)}', space=vmem, size = 0x12000, scoped, tag = 'internal scratch']
  %s0 = inlined_call_operand.vmem [shape: f32[1,16,128], index: 0, kind: input, shape index: {}]
  %s1 = inlined_call_operand.vmem [shape: bf16[128,128], index: 1, kind: input, shape index: {}]
  %s2 = inlined_call_operand.vmem [shape: f32[1,128], index: 2, kind: input, shape index: {}]
  %s3 = inlined_call_operand.vmem [shape: bf16[128,128], index: 3, kind: input, shape index: {}]
  %s4 = inlined_call_operand.vmem [shape: f32[1,128], index: 4, kind: input, shape index: {}]
  %s5 = inlined_call_operand.vmem [shape: bf16[128,128], index: 5, kind: input, shape index: {}]
  %s6 = inlined_call_operand.vmem [shape: f32[1,128], index: 6, kind: input, shape index: {}]
  %s7 = inlined_call_operand.vmem [shape: bf16[128,128], index: 7, kind: input, shape index: {}]
  %s8 = inlined_call_operand.vmem [shape: f32[1,128], index: 8, kind: input, shape index: {}]
  %s9 = inlined_call_operand.vmem [shape: bf16[128,128], index: 9, kind: input, shape index: {}]
  %s10 = inlined_call_operand.vmem [shape: f32[1,128], index: 10, kind: input, shape index: {}]
  %s11 = inlined_call_operand.hbm [shape: f32[1,1,128], index: 11, kind: output, shape index: {0}]
  %s12 = inlined_call_operand.vmem [shape: f32[1,16,128], index: 12, kind: output, shape index: {1}]
  %s13 = inlined_call_operand.hbm [shape: f32[1,1,128], index: 13, kind: output, shape index: {2}]
  %14 = xla_tuple %s11, %s12, %s13
  %s15 = sld [smem:[#allocation0]]
  $region70: #{mean_autoencoder_batched.1} parent=0
    _
  %s17 = ssub.s32 1, %s15
  %s18 = scalar_select 0, %s17, %s15
  $region1: #{mean_autoencoder_batched.1} parent=0
    #allocation2 [shape = 'u8[512]{0}', space=vmem, size = 0x400, scoped, tag = 'output window, operand 0, single buffered']
    #allocation3 [shape = 's32[1]{0}', space=sflag, size = 0x4, scoped, tag = 'scoped memory for mean_autoencoder_batched.1']
    #allocation4 [shape = 'u8[512]{0}', space=vmem, size = 0x400, scoped, tag = 'output window, operand 2, single buffered']
    #allocation5 [shape = 's32[1]{0}', space=sflag, size = 0x4, scoped, tag = 'scoped memory for mean_autoencoder_batched.1']
    %19 = vsyncpa [#allocation3], 0
    %20 = vsyncpa [#allocation5], 0
    // Predicated region
    $region2: #{mean_autoencoder_batched.1} parent=1 // pred_check
      _
    $region3: #{mean_autoencoder_batched.1} parent=1 // pred_check_branch
      %22 = sbr.rel (0) target = $region5
    $region4: #{mean_autoencoder_batched.1} parent=1 // pred_region
      _
    $region5: #{mean_autoencoder_batched.1} parent=1 // pred_fallthru
      _
    // Predicated region
    $region6: #{mean_autoencoder_batched.1} parent=1 // pred_check
      _
    $region7: #{mean_autoencoder_batched.1} parent=1 // pred_check_branch
      %24 = sbr.rel (0) target = $region9
    $region8: #{mean_autoencoder_batched.1} parent=1 // pred_region
      _
    $region9: #{mean_autoencoder_batched.1} parent=1 // pred_fallthru
      _
    // Predicated region
    $region10: #{mean_autoencoder_batched.1} parent=1 // pred_check
      _
    $region11: #{mean_autoencoder_batched.1} parent=1 // pred_check_branch
      %26 = sbr.rel (0) target = $region13
    $region12: #{mean_autoencoder_batched.1} parent=1 // pred_region
      _
    $region13: #{mean_autoencoder_batched.1} parent=1 // pred_fallthru
      _
    // Predicated region
    $region14: #{mean_autoencoder_batched.1} parent=1 // pred_check
      _
    $region15: #{mean_autoencoder_batched.1} parent=1 // pred_check_branch
      %28 = sbr.rel (0) target = $region17
    $region16: #{mean_autoencoder_batched.1} parent=1 // pred_region
      _
    $region17: #{mean_autoencoder_batched.1} parent=1 // pred_fallthru
      _
    // Predicated region
    $region18: #{mean_autoencoder_batched.1} parent=1 // pred_check
      _
    $region19: #{mean_autoencoder_batched.1} parent=1 // pred_check_branch
      %30 = sbr.rel (0) target = $region21
    $region20: #{mean_autoencoder_batched.1} parent=1 // pred_region
      _
    $region21: #{mean_autoencoder_batched.1} parent=1 // pred_fallthru
      _
    // Predicated region
    $region22: #{mean_autoencoder_batched.1} parent=1 // pred_check
      _
    $region23: #{mean_autoencoder_batched.1} parent=1 // pred_check_branch
      %32 = sbr.rel (0) target = $region25
    $region24: #{mean_autoencoder_batched.1} parent=1 // pred_region
      _
    $region25: #{mean_autoencoder_batched.1} parent=1 // pred_fallthru
      _
    // Predicated region
    $region26: #{mean_autoencoder_batched.1} parent=1 // pred_check
      _
    $region27: #{mean_autoencoder_batched.1} parent=1 // pred_check_branch
      %34 = sbr.rel (0) target = $region29
    $region28: #{mean_autoencoder_batched.1} parent=1 // pred_region
      _
    $region29: #{mean_autoencoder_batched.1} parent=1 // pred_fallthru
      _
    // Predicated region
    $region30: #{mean_autoencoder_batched.1} parent=1 // pred_check
      _
    $region31: #{mean_autoencoder_batched.1} parent=1 // pred_check_branch
      %36 = sbr.rel (0) target = $region33
    $region32: #{mean_autoencoder_batched.1} parent=1 // pred_region
      _
    $region33: #{mean_autoencoder_batched.1} parent=1 // pred_fallthru
      _
    // Predicated region
    $region34: #{mean_autoencoder_batched.1} parent=1 // pred_check
      _
    $region35: #{mean_autoencoder_batched.1} parent=1 // pred_check_branch
      %38 = sbr.rel (0) target = $region37
    $region36: #{mean_autoencoder_batched.1} parent=1 // pred_region
      _
    $region37: #{mean_autoencoder_batched.1} parent=1 // pred_fallthru
      _
    // Predicated region
    $region38: #{mean_autoencoder_batched.1} parent=1 // pred_check
      _
    $region39: #{mean_autoencoder_batched.1} parent=1 // pred_check_branch
      %40 = sbr.rel (0) target = $region41
    $region40: #{mean_autoencoder_batched.1} parent=1 // pred_region
      _
    $region41: #{mean_autoencoder_batched.1} parent=1 // pred_fallthru
      _
    // Predicated region
    $region42: #{mean_autoencoder_batched.1} parent=1 // pred_check
      _
    $region43: #{mean_autoencoder_batched.1} parent=1 // pred_check_branch
      %42 = sbr.rel (0) target = $region45
    $region44: #{mean_autoencoder_batched.1} parent=1 // pred_region
      _
    $region45: #{mean_autoencoder_batched.1} parent=1 // pred_fallthru
      _
    %v44 = vld [vmem:[%s0] sm:$0xff]
    %v45 = vld [vmem:[%s0 + $0x8] sm:$0xff]
    %v46 = vpack.c.bf16 %v45, %v44
    %v47 = vld [vmem:[%s1] sm:$0xf]
    %v48 = vld [vmem:[%s1 + $0x4] sm:$0xf]
    %v49 = vld [vmem:[%s1 + $0x8] sm:$0xf]
    %v50 = vld [vmem:[%s1 + $0xc] sm:$0xf]
    %v51 = vld [vmem:[%s1 + $0x10] sm:$0xf]
    %v52 = vld [vmem:[%s1 + $0x14] sm:$0xf]
    %v53 = vld [vmem:[%s1 + $0x18] sm:$0xf]
    %v54 = vld [vmem:[%s1 + $0x1c] sm:$0xf]
    %v55 = vld [vmem:[%s1 + $0x20] sm:$0xf]
    %v56 = vld [vmem:[%s1 + $0x24] sm:$0xf]
    %v57 = vld [vmem:[%s1 + $0x28] sm:$0xf]
    %v58 = vld [vmem:[%s1 + $0x2c] sm:$0xf]
    %v59 = vld [vmem:[%s1 + $0x30] sm:$0xf]
    %v60 = vld [vmem:[%s1 + $0x34] sm:$0xf]
    %v61 = vld [vmem:[%s1 + $0x38] sm:$0xf]
    %v62 = vld [vmem:[%s1 + $0x3c] sm:$0xf]
    %v63 = vld [vmem:[%s2] sm:$0x1]
    %v65 = vlaneseq
    %v66 = vshrl.u32 %v65, 7
    %v67 = vsub.s32 0, %v66
    %v68 = vrot.slane %v63, %v67
    %v86 = vunpack.c.l.b16 %v47
    %v87 = vunpack.c.l.b16 %v48
    %v88 = vunpack.c.l.b16 %v49
    %v89 = vunpack.c.l.b16 %v50
    %v90 = vunpack.c.l.b16 %v51
    %v91 = vunpack.c.l.b16 %v52
    %v92 = vunpack.c.l.b16 %v53
    %v93 = vunpack.c.l.b16 %v54
    %v94 = vunpack.c.l.b16 %v55
    %v95 = vunpack.c.l.b16 %v56
    %v96 = vunpack.c.l.b16 %v57
    %v97 = vunpack.c.l.b16 %v58
    %v98 = vunpack.c.l.b16 %v59
    %v99 = vunpack.c.l.b16 %v60
    %v100 = vunpack.c.l.b16 %v61
    %v101 = vunpack.c.l.b16 %v62
    %v102 = vpack.c.b16 %v87, %v86
    %v103 = vpack.c.b16 %v89, %v88
    %v104 = vpack.c.b16 %v91, %v90
    %v105 = vpack.c.b16 %v93, %v92
    %v106 = vpack.c.b16 %v95, %v94
    %v107 = vpack.c.b16 %v97, %v96
    %v108 = vpack.c.b16 %v99, %v98
    %v109 = vpack.c.b16 %v101, %v100
    %118 = vmatprep.subr.bf16.mxu0 0
    %119 = vmatpush1.bf16.msra.mxu0 %v102
    %120 = vmatprep.subr.bf16.mxu0 0
    %121 = vmatpush1.bf16.msra.mxu0 %v103
    %122 = vmatprep.subr.bf16.mxu0 0
    %123 = vmatpush1.bf16.msra.mxu0 %v104
    %124 = vmatprep.subr.bf16.mxu0 0
    %125 = vmatpush1.bf16.msra.mxu0 %v105
    %126 = vmatprep.subr.bf16.mxu0 0
    %127 = vmatpush1.bf16.msra.mxu0 %v106
    %128 = vmatprep.subr.bf16.mxu0 0
    %129 = vmatpush1.bf16.msra.mxu0 %v107
    %130 = vmatprep.subr.bf16.mxu0 0
    %131 = vmatpush1.bf16.msra.mxu0 %v108
    %132 = vmatprep.subr.bf16.mxu0 0
    %133 = vmatpush1.bf16.msra.mxu0 %v109
    %134 = vmatprep.subr.bf16.mxu0 0
    %135 = vmatpush1.bf16.msra.mxu0 0
    %136 = vmatprep.subr.bf16.mxu0 0
    %137 = vmatpush1.bf16.msra.mxu0 0
    %138 = vmatprep.subr.bf16.mxu0 0
    %139 = vmatpush1.bf16.msra.mxu0 0
    %140 = vmatprep.subr.bf16.mxu0 0
    %141 = vmatpush1.bf16.msra.mxu0 0
    %142 = vmatprep.subr.bf16.mxu0 0
    %143 = vmatpush1.bf16.msra.mxu0 0
    %144 = vmatprep.subr.bf16.mxu0 0
    %145 = vmatpush1.bf16.msra.mxu0 0
    %146 = vmatprep.subr.bf16.mxu0 0
    %147 = vmatpush1.bf16.msra.mxu0 0
    %148 = vmatprep.subr.bf16.mxu0 0
    %149 = vmatpush1.bf16.msra.mxu0 0
    %150 = vmatprep.mubr.bf16.mxu0 0
    %151 = vmatmul.mubr.bf16.gmra.mrb[0].mxu0 %v46
    %v152 = vpop.f32.mrb[0].mxu0
    %v153 = vadd.f32 %v68, %v152
    %v154 = vpop.f32.mrb[0].mxu0
    %v155 = vpop.f32.mrb[0].mxu0
    %v156 = vadd.f32 %v68, %v155
    %v157 = vpop.f32.mrb[0].mxu0
    %158 = vdwg.mxu0
    %v159 = vmax.f32 %v153, 0.0
    %v160 = vmax.f32 %v156, 0.0
    %v161 = vpack.c.bf16 %v160, %v159
    %v162 = vld [vmem:[%s3] sm:$0xf]
    %v163 = vld [vmem:[%s3 + $0x4] sm:$0xf]
    %v164 = vld [vmem:[%s3 + $0x8] sm:$0xf]
    %v165 = vld [vmem:[%s3 + $0xc] sm:$0xf]
    %v166 = vld [vmem:[%s3 + $0x10] sm:$0xf]
    %v167 = vld [vmem:[%s3 + $0x14] sm:$0xf]
    %v168 = vld [vmem:[%s3 + $0x18] sm:$0xf]
    %v169 = vld [vmem:[%s3 + $0x1c] sm:$0xf]
    %v170 = vld [vmem:[%s3 + $0x20] sm:$0xf]
    %v171 = vld [vmem:[%s3 + $0x24] sm:$0xf]
    %v172 = vld [vmem:[%s3 + $0x28] sm:$0xf]
    %v173 = vld [vmem:[%s3 + $0x2c] sm:$0xf]
    %v174 = vld [vmem:[%s3 + $0x30] sm:$0xf]
    %v175 = vld [vmem:[%s3 + $0x34] sm:$0xf]
    %v176 = vld [vmem:[%s3 + $0x38] sm:$0xf]
    %v177 = vld [vmem:[%s3 + $0x3c] sm:$0xf]
    %v178 = vld [vmem:[%s4] sm:$0x1]
    %v180 = vlaneseq
    %v181 = vshrl.u32 %v180, 7
    %v182 = vsub.s32 0, %v181
    %v183 = vrot.slane %v178, %v182
    %v201 = vunpack.c.l.b16 %v162
    %v202 = vunpack.c.l.b16 %v163
    %v203 = vunpack.c.l.b16 %v164
    %v204 = vunpack.c.l.b16 %v165
    %v205 = vunpack.c.l.b16 %v166
    %v206 = vunpack.c.l.b16 %v167
    %v207 = vunpack.c.l.b16 %v168
    %v208 = vunpack.c.l.b16 %v169
    %v209 = vunpack.c.l.b16 %v170
    %v210 = vunpack.c.l.b16 %v171
    %v211 = vunpack.c.l.b16 %v172
    %v212 = vunpack.c.l.b16 %v173
    %v213 = vunpack.c.l.b16 %v174
    %v214 = vunpack.c.l.b16 %v175
    %v215 = vunpack.c.l.b16 %v176
    %v216 = vunpack.c.l.b16 %v177
    %v217 = vpack.c.b16 %v202, %v201
    %v218 = vpack.c.b16 %v204, %v203
    %v219 = vpack.c.b16 %v206, %v205
    %v220 = vpack.c.b16 %v208, %v207
    %v221 = vpack.c.b16 %v210, %v209
    %v222 = vpack.c.b16 %v212, %v211
    %v223 = vpack.c.b16 %v214, %v213
    %v224 = vpack.c.b16 %v216, %v215
    %233 = vmatprep.subr.bf16.mxu0 0
    %234 = vmatpush1.bf16.msra.mxu0 %v217
    %235 = vmatprep.subr.bf16.mxu0 0
    %236 = vmatpush1.bf16.msra.mxu0 %v218
    %237 = vmatprep.subr.bf16.mxu0 0
    %238 = vmatpush1.bf16.msra.mxu0 %v219
    %239 = vmatprep.subr.bf16.mxu0 0
    %240 = vmatpush1.bf16.msra.mxu0 %v220
    %241 = vmatprep.subr.bf16.mxu0 0
    %242 = vmatpush1.bf16.msra.mxu0 %v221
    %243 = vmatprep.subr.bf16.mxu0 0
    %244 = vmatpush1.bf16.msra.mxu0 %v222
    %245 = vmatprep.subr.bf16.mxu0 0
    %246 = vmatpush1.bf16.msra.mxu0 %v223
    %247 = vmatprep.subr.bf16.mxu0 0
    %248 = vmatpush1.bf16.msra.mxu0 %v224
    %249 = vmatprep.subr.bf16.mxu0 0
    %250 = vmatpush1.bf16.msra.mxu0 0
    %251 = vmatprep.subr.bf16.mxu0 0
    %252 = vmatpush1.bf16.msra.mxu0 0
    %253 = vmatprep.subr.bf16.mxu0 0
    %254 = vmatpush1.bf16.msra.mxu0 0
    %255 = vmatprep.subr.bf16.mxu0 0
    %256 = vmatpush1.bf16.msra.mxu0 0
    %257 = vmatprep.subr.bf16.mxu0 0
    %258 = vmatpush1.bf16.msra.mxu0 0
    %259 = vmatprep.subr.bf16.mxu0 0
    %260 = vmatpush1.bf16.msra.mxu0 0
    %261 = vmatprep.subr.bf16.mxu0 0
    %262 = vmatpush1.bf16.msra.mxu0 0
    %263 = vmatprep.subr.bf16.mxu0 0
    %264 = vmatpush1.bf16.msra.mxu0 0
    %265 = vmatprep.mubr.bf16.mxu0 0
    %266 = vmatmul.mubr.bf16.gmra.mrb[0].mxu0 %v161
    %v267 = vpop.f32.mrb[0].mxu0
    %v268 = vadd.f32 %v183, %v267
    %v269 = vpop.f32.mrb[0].mxu0
    %v270 = vpop.f32.mrb[0].mxu0
    %v271 = vadd.f32 %v183, %v270
    %v272 = vpop.f32.mrb[0].mxu0
    %273 = vdwg.mxu0
    %v274 = vmax.f32 %v268, 0.0
    %v275 = vmax.f32 %v271, 0.0
    %v276 = vpack.c.bf16 %v275, %v274
    %v277 = vld [vmem:[%s5] sm:$0xf]
    %v278 = vld [vmem:[%s5 + $0x4] sm:$0xf]
    %v279 = vld [vmem:[%s5 + $0x8] sm:$0xf]
    %v280 = vld [vmem:[%s5 + $0xc] sm:$0xf]
    %v281 = vld [vmem:[%s5 + $0x10] sm:$0xf]
    %v282 = vld [vmem:[%s5 + $0x14] sm:$0xf]
    %v283 = vld [vmem:[%s5 + $0x18] sm:$0xf]
    %v284 = vld [vmem:[%s5 + $0x1c] sm:$0xf]
    %v285 = vld [vmem:[%s5 + $0x20] sm:$0xf]
    %v286 = vld [vmem:[%s5 + $0x24] sm:$0xf]
    %v287 = vld [vmem:[%s5 + $0x28] sm:$0xf]
    %v288 = vld [vmem:[%s5 + $0x2c] sm:$0xf]
    %v289 = vld [vmem:[%s5 + $0x30] sm:$0xf]
    %v290 = vld [vmem:[%s5 + $0x34] sm:$0xf]
    %v291 = vld [vmem:[%s5 + $0x38] sm:$0xf]
    %v292 = vld [vmem:[%s5 + $0x3c] sm:$0xf]
    %v293 = vld [vmem:[%s6] sm:$0x1]
    %v295 = vlaneseq
    %v296 = vshrl.u32 %v295, 7
    %v297 = vsub.s32 0, %v296
    %v298 = vrot.slane %v293, %v297
    %v316 = vunpack.c.l.b16 %v277
    %v317 = vunpack.c.l.b16 %v278
    %v318 = vunpack.c.l.b16 %v279
    %v319 = vunpack.c.l.b16 %v280
    %v320 = vunpack.c.l.b16 %v281
    %v321 = vunpack.c.l.b16 %v282
    %v322 = vunpack.c.l.b16 %v283
    %v323 = vunpack.c.l.b16 %v284
    %v324 = vunpack.c.l.b16 %v285
    %v325 = vunpack.c.l.b16 %v286
    %v326 = vunpack.c.l.b16 %v287
    %v327 = vunpack.c.l.b16 %v288
    %v328 = vunpack.c.l.b16 %v289
    %v329 = vunpack.c.l.b16 %v290
    %v330 = vunpack.c.l.b16 %v291
    %v331 = vunpack.c.l.b16 %v292
    %v332 = vpack.c.b16 %v317, %v316
    %v333 = vpack.c.b16 %v319, %v318
    %v334 = vpack.c.b16 %v321, %v320
    %v335 = vpack.c.b16 %v323, %v322
    %v336 = vpack.c.b16 %v325, %v324
    %v337 = vpack.c.b16 %v327, %v326
    %v338 = vpack.c.b16 %v329, %v328
    %v339 = vpack.c.b16 %v331, %v330
    %348 = vmatprep.subr.bf16.mxu0 0
    %349 = vmatpush1.bf16.msra.mxu0 %v332
    %350 = vmatprep.subr.bf16.mxu0 0
    %351 = vmatpush1.bf16.msra.mxu0 %v333
    %352 = vmatprep.subr.bf16.mxu0 0
    %353 = vmatpush1.bf16.msra.mxu0 %v334
    %354 = vmatprep.subr.bf16.mxu0 0
    %355 = vmatpush1.bf16.msra.mxu0 %v335
    %356 = vmatprep.subr.bf16.mxu0 0
    %357 = vmatpush1.bf16.msra.mxu0 %v336
    %358 = vmatprep.subr.bf16.mxu0 0
    %359 = vmatpush1.bf16.msra.mxu0 %v337
    %360 = vmatprep.subr.bf16.mxu0 0
    %361 = vmatpush1.bf16.msra.mxu0 %v338
    %362 = vmatprep.subr.bf16.mxu0 0
    %363 = vmatpush1.bf16.msra.mxu0 %v339
    %364 = vmatprep.subr.bf16.mxu0 0
    %365 = vmatpush1.bf16.msra.mxu0 0
    %366 = vmatprep.subr.bf16.mxu0 0
    %367 = vmatpush1.bf16.msra.mxu0 0
    %368 = vmatprep.subr.bf16.mxu0 0
    %369 = vmatpush1.bf16.msra.mxu0 0
    %370 = vmatprep.subr.bf16.mxu0 0
    %371 = vmatpush1.bf16.msra.mxu0 0
    %372 = vmatprep.subr.bf16.mxu0 0
    %373 = vmatpush1.bf16.msra.mxu0 0
    %374 = vmatprep.subr.bf16.mxu0 0
    %375 = vmatpush1.bf16.msra.mxu0 0
    %376 = vmatprep.subr.bf16.mxu0 0
    %377 = vmatpush1.bf16.msra.mxu0 0
    %378 = vmatprep.subr.bf16.mxu0 0
    %379 = vmatpush1.bf16.msra.mxu0 0
    %380 = vmatprep.mubr.bf16.mxu0 0
    %381 = vmatmul.mubr.bf16.gmra.mrb[0].mxu0 %v276
    %v382 = vpop.f32.mrb[0].mxu0
    %v383 = vadd.f32 %v298, %v382
    %v384 = vpop.f32.mrb[0].mxu0
    %v385 = vpop.f32.mrb[0].mxu0
    %v386 = vadd.f32 %v298, %v385
    %v387 = vpop.f32.mrb[0].mxu0
    %388 = vdwg.mxu0
    %v389 = vmax.f32 %v383, 0.0
    %v390 = vmax.f32 %v386, 0.0
    %v391 = vpack.c.bf16 %v390, %v389
    %v392 = vld [vmem:[%s7] sm:$0xf]
    %v393 = vld [vmem:[%s7 + $0x4] sm:$0xf]
    %v394 = vld [vmem:[%s7 + $0x8] sm:$0xf]
    %v395 = vld [vmem:[%s7 + $0xc] sm:$0xf]
    %v396 = vld [vmem:[%s7 + $0x10] sm:$0xf]
    %v397 = vld [vmem:[%s7 + $0x14] sm:$0xf]
    %v398 = vld [vmem:[%s7 + $0x18] sm:$0xf]
    %v399 = vld [vmem:[%s7 + $0x1c] sm:$0xf]
    %v400 = vld [vmem:[%s7 + $0x20] sm:$0xf]
    %v401 = vld [vmem:[%s7 + $0x24] sm:$0xf]
    %v402 = vld [vmem:[%s7 + $0x28] sm:$0xf]
    %v403 = vld [vmem:[%s7 + $0x2c] sm:$0xf]
    %v404 = vld [vmem:[%s7 + $0x30] sm:$0xf]
    %v405 = vld [vmem:[%s7 + $0x34] sm:$0xf]
    %v406 = vld [vmem:[%s7 + $0x38] sm:$0xf]
    %v407 = vld [vmem:[%s7 + $0x3c] sm:$0xf]
    %v408 = vld [vmem:[%s8] sm:$0x1]
    %v410 = vlaneseq
    %v411 = vshrl.u32 %v410, 7
    %v412 = vsub.s32 0, %v411
    %v413 = vrot.slane %v408, %v412
    %v431 = vunpack.c.l.b16 %v392
    %v432 = vunpack.c.l.b16 %v393
    %v433 = vunpack.c.l.b16 %v394
    %v434 = vunpack.c.l.b16 %v395
    %v435 = vunpack.c.l.b16 %v396
    %v436 = vunpack.c.l.b16 %v397
    %v437 = vunpack.c.l.b16 %v398
    %v438 = vunpack.c.l.b16 %v399
    %v439 = vunpack.c.l.b16 %v400
    %v440 = vunpack.c.l.b16 %v401
    %v441 = vunpack.c.l.b16 %v402
    %v442 = vunpack.c.l.b16 %v403
    %v443 = vunpack.c.l.b16 %v404
    %v444 = vunpack.c.l.b16 %v405
    %v445 = vunpack.c.l.b16 %v406
    %v446 = vunpack.c.l.b16 %v407
    %v447 = vpack.c.b16 %v432, %v431
    %v448 = vpack.c.b16 %v434, %v433
    %v449 = vpack.c.b16 %v436, %v435
    %v450 = vpack.c.b16 %v438, %v437
    %v451 = vpack.c.b16 %v440, %v439
    %v452 = vpack.c.b16 %v442, %v441
    %v453 = vpack.c.b16 %v444, %v443
    %v454 = vpack.c.b16 %v446, %v445
    %463 = vmatprep.subr.bf16.mxu0 0
    %464 = vmatpush1.bf16.msra.mxu0 %v447
    %465 = vmatprep.subr.bf16.mxu0 0
    %466 = vmatpush1.bf16.msra.mxu0 %v448
    %467 = vmatprep.subr.bf16.mxu0 0
    %468 = vmatpush1.bf16.msra.mxu0 %v449
    %469 = vmatprep.subr.bf16.mxu0 0
    %470 = vmatpush1.bf16.msra.mxu0 %v450
    %471 = vmatprep.subr.bf16.mxu0 0
    %472 = vmatpush1.bf16.msra.mxu0 %v451
    %473 = vmatprep.subr.bf16.mxu0 0
    %474 = vmatpush1.bf16.msra.mxu0 %v452
    %475 = vmatprep.subr.bf16.mxu0 0
    %476 = vmatpush1.bf16.msra.mxu0 %v453
    %477 = vmatprep.subr.bf16.mxu0 0
    %478 = vmatpush1.bf16.msra.mxu0 %v454
    %479 = vmatprep.subr.bf16.mxu0 0
    %480 = vmatpush1.bf16.msra.mxu0 0
    %481 = vmatprep.subr.bf16.mxu0 0
    %482 = vmatpush1.bf16.msra.mxu0 0
    %483 = vmatprep.subr.bf16.mxu0 0
    %484 = vmatpush1.bf16.msra.mxu0 0
    %485 = vmatprep.subr.bf16.mxu0 0
    %486 = vmatpush1.bf16.msra.mxu0 0
    %487 = vmatprep.subr.bf16.mxu0 0
    %488 = vmatpush1.bf16.msra.mxu0 0
    %489 = vmatprep.subr.bf16.mxu0 0
    %490 = vmatpush1.bf16.msra.mxu0 0
    %491 = vmatprep.subr.bf16.mxu0 0
    %492 = vmatpush1.bf16.msra.mxu0 0
    %493 = vmatprep.subr.bf16.mxu0 0
    %494 = vmatpush1.bf16.msra.mxu0 0
    %495 = vmatprep.mubr.bf16.mxu0 0
    %496 = vmatmul.mubr.bf16.gmra.mrb[0].mxu0 %v391
    %v497 = vpop.f32.mrb[0].mxu0
    %v498 = vadd.f32 %v413, %v497
    %v499 = vpop.f32.mrb[0].mxu0
    %v500 = vpop.f32.mrb[0].mxu0
    %v501 = vadd.f32 %v413, %v500
    %v502 = vpop.f32.mrb[0].mxu0
    %503 = vdwg.mxu0
    %v504 = vlaneseq
    %v505 = vshrl.u32 %v504, 7
    %v506 = vadd.s32 %v505, 8
    %vm507 = vcmp.lt.s32.totalorder %v505, 10
    %vm508 = vcmp.lt.s32.totalorder %v506, 10
    %v509 = vsub.f32 %v44, %v498
    %v510 = vsub.f32 %v45, %v501
    %v511 = vsel %vm507, 1, 0
    %v512 = vsel %vm508, 1, 0
    %vm513 = vcmp.eq.s32.totalorder %v511, 1
    %vm514 = vcmp.eq.s32.totalorder %v512, 1
    %v515 = vsel %vm513, %v509, 0.0
    %v516 = vsel %vm514, %v510, 0.0
    %v517 = vmul.f32 %v515, %v515
    %v518 = vmul.f32 %v516, %v516
    %v519 = vadd.f32 %v517, %v518
    %520 = vadd.xlane.f32.xlu0 %v519
    %v521 = vpop.xlane.xlu0 %520
    %v522 = vrot.slane %v521, 4
    %v523 = vadd.f32 %v521, %v522
    %v524 = vrot.slane %v523, 2
    %v525 = vadd.f32 %v523, %v524
    %v526 = vrot.slane %v525, 1
    %v527 = vadd.f32 %v525, %v526
    %s528 = vtos %v527
    %s529 = smul.f32 %s528, 0.5
    %v530 = vrcp.pop 690.0
    %s531 = vtos %v530
    %s532 = smul.f32 %s529, %s531
    %v533 = vstv %s532
    %534 = vst [vmem:[#allocation4] sm:$0x1] %v533
    %v535 = vld [vmem:[%s9] sm:$0xf]
    %v536 = vld [vmem:[%s9 + $0x4] sm:$0xf]
    %v537 = vld [vmem:[%s9 + $0x8] sm:$0xf]
    %v538 = vld [vmem:[%s9 + $0xc] sm:$0xf]
    %v539 = vld [vmem:[%s9 + $0x10] sm:$0xf]
    %v540 = vld [vmem:[%s9 + $0x14] sm:$0xf]
    %v541 = vld [vmem:[%s9 + $0x18] sm:$0xf]
    %v542 = vld [vmem:[%s9 + $0x1c] sm:$0xf]
    %v543 = vld [vmem:[%s9 + $0x20] sm:$0xf]
    %v544 = vld [vmem:[%s9 + $0x24] sm:$0xf]
    %v545 = vld [vmem:[%s9 + $0x28] sm:$0xf]
    %v546 = vld [vmem:[%s9 + $0x2c] sm:$0xf]
    %v547 = vld [vmem:[%s9 + $0x30] sm:$0xf]
    %v548 = vld [vmem:[%s9 + $0x34] sm:$0xf]
    %v549 = vld [vmem:[%s9 + $0x38] sm:$0xf]
    %v550 = vld [vmem:[%s9 + $0x3c] sm:$0xf]
    %v551 = vld [vmem:[%s10] sm:$0x1]
    %v553 = vlaneseq
    %v554 = vshrl.u32 %v553, 7
    %v555 = vsub.s32 0, %v554
    %v556 = vrot.slane %v551, %v555
    %v574 = vunpack.c.l.b16 %v535
    %v575 = vunpack.c.l.b16 %v536
    %v576 = vunpack.c.l.b16 %v537
    %v577 = vunpack.c.l.b16 %v538
    %v578 = vunpack.c.l.b16 %v539
    %v579 = vunpack.c.l.b16 %v540
    %v580 = vunpack.c.l.b16 %v541
    %v581 = vunpack.c.l.b16 %v542
    %v582 = vunpack.c.l.b16 %v543
    %v583 = vunpack.c.l.b16 %v544
    %v584 = vunpack.c.l.b16 %v545
    %v585 = vunpack.c.l.b16 %v546
    %v586 = vunpack.c.l.b16 %v547
    %v587 = vunpack.c.l.b16 %v548
    %v588 = vunpack.c.l.b16 %v549
    %v589 = vunpack.c.l.b16 %v550
    %v590 = vpack.c.b16 %v575, %v574
    %v591 = vpack.c.b16 %v577, %v576
    %v592 = vpack.c.b16 %v579, %v578
    %v593 = vpack.c.b16 %v581, %v580
    %v594 = vpack.c.b16 %v583, %v582
    %v595 = vpack.c.b16 %v585, %v584
    %v596 = vpack.c.b16 %v587, %v586
    %v597 = vpack.c.b16 %v589, %v588
    %606 = vmatprep.subr.bf16.mxu0 0
    %607 = vmatpush1.bf16.msra.mxu0 %v590
    %608 = vmatprep.subr.bf16.mxu0 0
    %609 = vmatpush1.bf16.msra.mxu0 %v591
    %610 = vmatprep.subr.bf16.mxu0 0
    %611 = vmatpush1.bf16.msra.mxu0 %v592
    %612 = vmatprep.subr.bf16.mxu0 0
    %613 = vmatpush1.bf16.msra.mxu0 %v593
    %614 = vmatprep.subr.bf16.mxu0 0
    %615 = vmatpush1.bf16.msra.mxu0 %v594
    %616 = vmatprep.subr.bf16.mxu0 0
    %617 = vmatpush1.bf16.msra.mxu0 %v595
    %618 = vmatprep.subr.bf16.mxu0 0
    %619 = vmatpush1.bf16.msra.mxu0 %v596
    %620 = vmatprep.subr.bf16.mxu0 0
    %621 = vmatpush1.bf16.msra.mxu0 %v597
    %622 = vmatprep.subr.bf16.mxu0 0
    %623 = vmatpush1.bf16.msra.mxu0 0
    %624 = vmatprep.subr.bf16.mxu0 0
    %625 = vmatpush1.bf16.msra.mxu0 0
    %626 = vmatprep.subr.bf16.mxu0 0
    %627 = vmatpush1.bf16.msra.mxu0 0
    %628 = vmatprep.subr.bf16.mxu0 0
    %629 = vmatpush1.bf16.msra.mxu0 0
    %630 = vmatprep.subr.bf16.mxu0 0
    %631 = vmatpush1.bf16.msra.mxu0 0
    %632 = vmatprep.subr.bf16.mxu0 0
    %633 = vmatpush1.bf16.msra.mxu0 0
    %634 = vmatprep.subr.bf16.mxu0 0
    %635 = vmatpush1.bf16.msra.mxu0 0
    %636 = vmatprep.subr.bf16.mxu0 0
    %637 = vmatpush1.bf16.msra.mxu0 0
    %638 = vmatprep.mubr.bf16.mxu0 0
    %639 = vmatmul.mubr.bf16.gmra.mrb[0].mxu0 %v276
    %v640 = vpop.f32.mrb[0].mxu0
    %v641 = vadd.f32 %v556, %v640
    %v642 = vpop.f32.mrb[0].mxu0
    %v643 = vpop.f32.mrb[0].mxu0
    %v644 = vadd.f32 %v556, %v643
    %v645 = vpop.f32.mrb[0].mxu0
    %646 = vdwg.mxu0
    %v647 = vmax.f32 %v641, 0.0
    %v648 = vmax.f32 %v644, 0.0
    %v649 = vsel %vm513, %v647, 0.0
    %v650 = vsel %vm514, %v648, 0.0
    %651 = vst [vmem:[%s12] sm:$0xff] %v649
    %652 = vst [vmem:[%s12 + $0x8] sm:$0xff] %v650
    %v653 = vadd.f32 %v649, %v650
    %v654 = vrot.slane %v653, 4
    %v655 = vadd.f32 %v653, %v654
    %v656 = vrot.slane %v655, 2
    %v657 = vadd.f32 %v655, %v656
    %v658 = vrot.slane %v657, 1
    %v659 = vadd.f32 %v657, %v658
    %v660 = vrcp.pop 10.0
    %v661 = vmul.f32 %v659, %v660
    %662 = vst [vmem:[#allocation2] sm:$0x1] %v661
    // Predicated region
    $region46: #{mean_autoencoder_batched.1} parent=1 // pred_check
      _
    $region47: #{mean_autoencoder_batched.1} parent=1 // pred_check_branch
      %664 = sbr.rel (0) target = $region49
    $region48: #{mean_autoencoder_batched.1} parent=1 // pred_region
      %s666 = ssub.s32 16, 16
      %667 = vsyncadd [#allocation3], %s666
      %s669 = sshll.u32 [#allocation2], 4
      %s670 = int_to_ptr.vmem [resolvable:$true] %s669
      %672 = dma.vmem_to_hbm [thread:$0]  %s670, 16, %s11, [#allocation3]
    $region49: #{mean_autoencoder_batched.1} parent=1 // pred_fallthru
      _
    // Predicated region
    $region50: #{mean_autoencoder_batched.1} parent=1 // pred_check
      _
    $region51: #{mean_autoencoder_batched.1} parent=1 // pred_check_branch
      %674 = sbr.rel (0) target = $region53
    $region52: #{mean_autoencoder_batched.1} parent=1 // pred_region
      _
    $region53: #{mean_autoencoder_batched.1} parent=1 // pred_fallthru
      _
    // Predicated region
    $region54: #{mean_autoencoder_batched.1} parent=1 // pred_check
      _
    $region55: #{mean_autoencoder_batched.1} parent=1 // pred_check_branch
      %676 = sbr.rel (0) target = $region57
    $region56: #{mean_autoencoder_batched.1} parent=1 // pred_region
      %s678 = ssub.s32 16, 16
      %679 = vsyncadd [#allocation5], %s678
      %s681 = sshll.u32 [#allocation4], 4
      %s682 = int_to_ptr.vmem [resolvable:$true] %s681
      %684 = dma.vmem_to_hbm [thread:$0]  %s682, 16, %s13, [#allocation5]
    $region57: #{mean_autoencoder_batched.1} parent=1 // pred_fallthru
      _
    // Predicated region
    $region58: #{mean_autoencoder_batched.1} parent=1 // pred_check
      _
    $region59: #{mean_autoencoder_batched.1} parent=1 // pred_check_branch
      %686 = sbr.rel (0) target = $region61
    $region60: #{mean_autoencoder_batched.1} parent=1 // pred_region
      %687 = dma.done [#allocation3], 16
    $region61: #{mean_autoencoder_batched.1} parent=1 // pred_fallthru
      _
    // Predicated region
    $region62: #{mean_autoencoder_batched.1} parent=1 // pred_check
      _
    $region63: #{mean_autoencoder_batched.1} parent=1 // pred_check_branch
      %689 = sbr.rel (0) target = $region65
    $region64: #{mean_autoencoder_batched.1} parent=1 // pred_region
      _
    $region65: #{mean_autoencoder_batched.1} parent=1 // pred_fallthru
      _
    // Predicated region
    $region66: #{mean_autoencoder_batched.1} parent=1 // pred_check
      _
    $region67: #{mean_autoencoder_batched.1} parent=1 // pred_check_branch
      %691 = sbr.rel (0) target = $region69
    $region68: #{mean_autoencoder_batched.1} parent=1 // pred_region
      %692 = dma.done [#allocation5], 16
    $region69: #{mean_autoencoder_batched.1} parent=1 // pred_fallthru
      _
    %693 = vsyncpa [#allocation3], 1
    %694 = vsyncpa [#allocation5], 1

</llo_original>
